<compile_context>
chip_gen: v7x
topology: tpu7x:2x2x1
jax: 0.10.0
libtpu: 0.0.40
codegen_flags: <defaults>
</compile_context>

<pallas_src>
import jax
import jax.numpy as jnp
from jax.experimental import pallas as pl
from jax.experimental.pallas import tpu as pltpu  # noqa: F401  (kept for TPU-specific tuning hooks)

DIM_Y = 10
DIM_Y_PAD = 16          # pad ragged contraction dim 10 -> 16 (one packed sublane group)
HIDDEN = 1024
DIM_Z = 64
BN_EPS = 1e-5
LEAKY_SLOPE = 0.2


def pz_y_kernel(
    y_ref,      # (B, DIM_Y_PAD)       f32  zero-padded input
    w1_ref,     # (DIM_Y_PAD, HIDDEN)  f32  zero-padded rows
    b1_ref,     # (1, HIDDEN)          f32
    gamma_ref,  # (1, HIDDEN)          f32  BatchNorm weight
    beta_ref,   # (1, HIDDEN)          f32  BatchNorm bias
    w2_ref,     # (HIDDEN, 2*DIM_Z)    bf16 fused mean|logvar head
    b2_ref,     # (1, 2*DIM_Z)         f32
    eps_ref,    # (B, DIM_Z)           f32  standard normal noise
    z_ref,      # (B, DIM_Z)           f32  out
    ml_ref,     # (B, 2*DIM_Z)         f32  out: [mean | logvar], lane-dense 128
):
    # fc: Linear(dim_y, 1024).  Zero-padded K columns/rows contribute nothing.
    h = jnp.dot(y_ref[...], w1_ref[...], preferred_element_type=jnp.float32) + b1_ref[...]

    # BatchNorm1d(1024) -- training-mode semantics: biased batch statistics.
    # Two-pass variance kept for numerical stability (cheap at B=8).
    mu = jnp.mean(h, axis=0, keepdims=True)
    var = jnp.mean((h - mu) * (h - mu), axis=0, keepdims=True)
    h = (h - mu) * jax.lax.rsqrt(var + BN_EPS) * gamma_ref[...] + beta_ref[...]

    # LeakyReLU(0.2)
    h = jnp.where(h >= 0, h, LEAKY_SLOPE * h)

    # Fused Gaussian head: single (B,1024)@(1024,128) bf16 MXU GEMM, f32 accumulation.
    logits = (
        jnp.dot(h.astype(jnp.bfloat16), w2_ref[...], preferred_element_type=jnp.float32)
        + b2_ref[...]
    )
    ml_ref[...] = logits  # lane-dense (multiple-of-128) unmasked store

    # Reparameterize: z = mean + eps * exp(0.5 * logvar)
    mean = logits[:, :DIM_Z]
    logvar = logits[:, DIM_Z:]
    std = jnp.exp(0.5 * logvar)
    z_ref[...] = mean + eps_ref[...] * std


def pz_y_forward(y, params, eps):
    B = y.shape[0]

    # Zero-pad the ragged contraction dim (10 -> 16); zeros leave y @ w1 unchanged.
    y_pad = jnp.pad(y.astype(jnp.float32), ((0, 0), (0, DIM_Y_PAD - DIM_Y)))
    w1_pad = jnp.pad(params["w1"].astype(jnp.float32), ((0, DIM_Y_PAD - DIM_Y), (0, 0)))

    inputs = (
        y_pad,
        w1_pad,
        params["b1"].astype(jnp.float32),
        params["gamma"].astype(jnp.float32),
        params["beta"].astype(jnp.float32),
        params["w2"].astype(jnp.bfloat16),   # dominant HBM traffic -> bf16
        params["b2"].astype(jnp.float32),
        eps.astype(jnp.float32),
    )

    def full_spec(arr):
        nd = arr.ndim
        return pl.BlockSpec(arr.shape, lambda *_, _nd=nd: (0,) * _nd)

    out_shapes = (
        jax.ShapeDtypeStruct((B, DIM_Z), jnp.float32),       # z
        jax.ShapeDtypeStruct((B, 2 * DIM_Z), jnp.float32),   # mean | logvar (lane-dense)
    )
    out_specs = (
        pl.BlockSpec((B, DIM_Z), lambda: (0, 0)),
        pl.BlockSpec((B, 2 * DIM_Z), lambda: (0, 0)),
    )

    z, meanlogvar = pl.pallas_call(
        pz_y_kernel,
        out_shape=out_shapes,
        in_specs=[full_spec(a) for a in inputs],
        out_specs=out_specs,
        # No vmem_limit override: working set is ~1 MiB, default scoped VMEM is ample
        # and leaves headroom on v7x's 64 MiB per-core VMEM.
    )(*inputs)

    mean = meanlogvar[:, :DIM_Z]
    logvar = meanlogvar[:, DIM_Z:]
    return z, mean, logvar


def init_params(key):
    """Deterministic synthetic parameters with the shapes Pz_y.__init__ implies.

    Weights are stored transposed vs. PyTorch (in_features, out_features) so the
    kernel computes y @ W (+ b) directly on the MXU. The Gaussian head is kept
    fused as a single (1024, 2*dim_z) weight (== torch Linear(1024, 2*dim_z))."""
    k1, k2, k3, k4, k5 = jax.random.split(key, 5)
    lim1 = 1.0 / jnp.sqrt(DIM_Y)
    w1 = jax.random.uniform(k1, (DIM_Y, HIDDEN), jnp.float32, -lim1, lim1)
    b1 = jax.random.uniform(k2, (1, HIDDEN), jnp.float32, -lim1, lim1)
    gamma = jnp.ones((1, HIDDEN), jnp.float32)   # BatchNorm1d init
    beta = jnp.zeros((1, HIDDEN), jnp.float32)
    lim2 = 1.0 / jnp.sqrt(HIDDEN)
    w2 = jax.random.uniform(k3, (HIDDEN, 2 * DIM_Z), jnp.float32, -lim2, lim2)
    b2 = jax.random.uniform(k4, (1, 2 * DIM_Z), jnp.float32, -lim2, lim2)
    return {"w1": w1, "b1": b1, "gamma": gamma, "beta": beta, "w2": w2, "b2": b2}, k5


if __name__ == "__main__":
    key = jax.random.PRNGKey(0)
    params, key = init_params(key)

    B = 8
    ky, keps = jax.random.split(key)
    y = jax.random.normal(ky, (B, DIM_Y), jnp.float32)
    eps = jax.random.normal(keps, (B, DIM_Z), jnp.float32)

    # TODO(synk): BatchNorm running_mean/running_var update (training-mode side effect)
    # is not modeled; only the forward values are produced.
    z, mean, logvar = pz_y_forward(y, params, eps)
    jax.block_until_ready((z, mean, logvar))

    assert z.shape == (B, DIM_Z) and mean.shape == (B, DIM_Z) and logvar.shape == (B, DIM_Z)
    assert jnp.all(jnp.isfinite(z)) and jnp.all(jnp.isfinite(mean)) and jnp.all(jnp.isfinite(logvar))
    print("KERNEL_OK")
</pallas_src>

<mosaic_0001>
module attributes {stable_mosaic.version = 11 : i64} {
  func.func @pz_y_kernel(%arg0: memref<8x16xf32, #tpu.memory_space<vmem>>, %arg1: memref<16x1024xf32, #tpu.memory_space<vmem>>, %arg2: memref<1x1024xf32, #tpu.memory_space<vmem>>, %arg3: memref<1x1024xf32, #tpu.memory_space<vmem>>, %arg4: memref<1x1024xf32, #tpu.memory_space<vmem>>, %arg5: memref<1024x128xbf16, #tpu.memory_space<vmem>>, %arg6: memref<1x128xf32, #tpu.memory_space<vmem>>, %arg7: memref<8x64xf32, #tpu.memory_space<vmem>>, %arg8: memref<8x64xf32, #tpu.memory_space<vmem>>, %arg9: memref<8x128xf32, #tpu.memory_space<vmem>>) attributes {dimension_semantics = [], scalar_prefetch = 0 : i64, scratch_operands = 0 : i64, tpu.core_type = #tpu.core_type<tc>} {
    %c0 = arith.constant 0 : index
    %c0_0 = arith.constant 0 : index
    %0 = vector.load %arg0[%c0, %c0_0] : memref<8x16xf32, #tpu.memory_space<vmem>>, vector<8x16xf32>
    %c0_1 = arith.constant 0 : index
    %c0_2 = arith.constant 0 : index
    %1 = vector.load %arg1[%c0_1, %c0_2] : memref<16x1024xf32, #tpu.memory_space<vmem>>, vector<16x1024xf32>
    %cst = arith.constant dense<0.000000e+00> : vector<8x1024xf32>
    %2 = tpu.matmul %0, %1, %cst {dimension_numbers = #tpu.dot_dimension_numbers<[1], [0], [0], [1], [0, 0, 1, 1], [], []>} : vector<8x16xf32>, vector<16x1024xf32>, vector<8x1024xf32> -> vector<8x1024xf32>
    %c0_3 = arith.constant 0 : index
    %c0_4 = arith.constant 0 : index
    %3 = vector.load %arg2[%c0_3, %c0_4] : memref<1x1024xf32, #tpu.memory_space<vmem>>, vector<1x1024xf32>
    %4 = vector.broadcast %3 : vector<1x1024xf32> to vector<8x1024xf32>
    %5 = arith.addf %2, %4 : vector<8x1024xf32>
    %cst_5 = arith.constant dense<0.000000e+00> : vector<1024xf32>
    %6 = vector.multi_reduction <add>, %5, %cst_5 [0] : vector<8x1024xf32> to vector<1024xf32>
    %7 = vector.shape_cast %6 : vector<1024xf32> to vector<1x1024xf32>
    %cst_6 = arith.constant 8.000000e+00 : f32
    %8 = vector.broadcast %cst_6 : f32 to vector<1x1024xf32>
    %9 = arith.divf %7, %8 : vector<1x1024xf32>
    %10 = vector.broadcast %9 : vector<1x1024xf32> to vector<8x1024xf32>
    %11 = arith.subf %5, %10 : vector<8x1024xf32>
    %12 = vector.broadcast %9 : vector<1x1024xf32> to vector<8x1024xf32>
    %13 = arith.subf %5, %12 : vector<8x1024xf32>
    %14 = arith.mulf %11, %13 : vector<8x1024xf32>
    %cst_7 = arith.constant dense<0.000000e+00> : vector<1024xf32>
    %15 = vector.multi_reduction <add>, %14, %cst_7 [0] : vector<8x1024xf32> to vector<1024xf32>
    %16 = vector.shape_cast %15 : vector<1024xf32> to vector<1x1024xf32>
    %cst_8 = arith.constant 8.000000e+00 : f32
    %17 = vector.broadcast %cst_8 : f32 to vector<1x1024xf32>
    %18 = arith.divf %16, %17 : vector<1x1024xf32>
    %19 = vector.broadcast %9 : vector<1x1024xf32> to vector<8x1024xf32>
    %20 = arith.subf %5, %19 : vector<8x1024xf32>
    %cst_9 = arith.constant 9.99999974E-6 : f32
    %21 = vector.broadcast %cst_9 : f32 to vector<1x1024xf32>
    %22 = arith.addf %18, %21 : vector<1x1024xf32>
    %23 = math.rsqrt %22 : vector<1x1024xf32>
    %24 = vector.broadcast %23 : vector<1x1024xf32> to vector<8x1024xf32>
    %25 = arith.mulf %20, %24 : vector<8x1024xf32>
    %c0_10 = arith.constant 0 : index
    %c0_11 = arith.constant 0 : index
    %26 = vector.load %arg3[%c0_10, %c0_11] : memref<1x1024xf32, #tpu.memory_space<vmem>>, vector<1x1024xf32>
    %27 = vector.broadcast %26 : vector<1x1024xf32> to vector<8x1024xf32>
    %28 = arith.mulf %25, %27 : vector<8x1024xf32>
    %c0_12 = arith.constant 0 : index
    %c0_13 = arith.constant 0 : index
    %29 = vector.load %arg4[%c0_12, %c0_13] : memref<1x1024xf32, #tpu.memory_space<vmem>>, vector<1x1024xf32>
    %30 = vector.broadcast %29 : vector<1x1024xf32> to vector<8x1024xf32>
    %31 = arith.addf %28, %30 : vector<8x1024xf32>
    %cst_14 = arith.constant 0.000000e+00 : f32
    %32 = vector.broadcast %cst_14 : f32 to vector<8x1024xf32>
    %33 = arith.cmpf oge, %31, %32 : vector<8x1024xf32>
    %cst_15 = arith.constant 2.000000e-01 : f32
    %34 = vector.broadcast %cst_15 : f32 to vector<8x1024xf32>
    %35 = arith.mulf %34, %31 : vector<8x1024xf32>
    %36 = arith.select %33, %31, %35 : vector<8x1024xi1>, vector<8x1024xf32>
    %37 = arith.truncf %36 : vector<8x1024xf32> to vector<8x1024xbf16>
    %c0_16 = arith.constant 0 : index
    %c0_17 = arith.constant 0 : index
    %38 = vector.load %arg5[%c0_16, %c0_17] : memref<1024x128xbf16, #tpu.memory_space<vmem>>, vector<1024x128xbf16>
    %cst_18 = arith.constant dense<0.000000e+00> : vector<8x128xf32>
    %39 = tpu.matmul %37, %38, %cst_18 {dimension_numbers = #tpu.dot_dimension_numbers<[1], [0], [0], [1], [0, 0, 1, 1], [], []>} : vector<8x1024xbf16>, vector<1024x128xbf16>, vector<8x128xf32> -> vector<8x128xf32>
    %c0_19 = arith.constant 0 : index
    %c0_20 = arith.constant 0 : index
    %40 = vector.load %arg6[%c0_19, %c0_20] : memref<1x128xf32, #tpu.memory_space<vmem>>, vector<1x128xf32>
    %41 = vector.broadcast %40 : vector<1x128xf32> to vector<8x128xf32>
    %42 = arith.addf %39, %41 : vector<8x128xf32>
    %c0_21 = arith.constant 0 : index
    %c0_22 = arith.constant 0 : index
    %43 = vector.load %arg9[%c0_21, %c0_22] : memref<8x128xf32, #tpu.memory_space<vmem>>, vector<8x128xf32>
    tpu.vector_store %arg9[%c0_21, %c0_22], %42 {strides = array<i32>} : memref<8x128xf32, #tpu.memory_space<vmem>>, vector<8x128xf32>,
    %44 = vector.extract_strided_slice %42 {offsets = [0, 0], sizes = [8, 64], strides = [1, 1]} : vector<8x128xf32> to vector<8x64xf32>
    %45 = vector.extract_strided_slice %42 {offsets = [0, 64], sizes = [8, 64], strides = [1, 1]} : vector<8x128xf32> to vector<8x64xf32>
    %cst_23 = arith.constant 5.000000e-01 : f32
    %46 = vector.broadcast %cst_23 : f32 to vector<8x64xf32>
    %47 = arith.mulf %46, %45 : vector<8x64xf32>
    %48 = math.exp %47 : vector<8x64xf32>
    %c0_24 = arith.constant 0 : index
    %c0_25 = arith.constant 0 : index
    %49 = vector.load %arg7[%c0_24, %c0_25] : memref<8x64xf32, #tpu.memory_space<vmem>>, vector<8x64xf32>
    %50 = arith.mulf %49, %48 : vector<8x64xf32>
    %51 = arith.addf %44, %50 : vector<8x64xf32>
    %c0_26 = arith.constant 0 : index
    %c0_27 = arith.constant 0 : index
    %52 = vector.load %arg8[%c0_26, %c0_27] : memref<8x64xf32, #tpu.memory_space<vmem>>, vector<8x64xf32>
    tpu.vector_store %arg8[%c0_26, %c0_27], %51 {strides = array<i32>} : memref<8x64xf32, #tpu.memory_space<vmem>>, vector<8x64xf32>,
    return
  }
}

</mosaic_0001>

<llo_original>
// kernel: tpu_custom_call.1
$region0: #{tpu_custom_call.1}
  #allocation0 [shape = 'u32[]', space=smem, size = 0x4, offset = 0x4, fixed_abs, tag = 'smem constant byte address 0x4 - core index']
  #allocation1 [shape = 'u32[144,128]{1,0:T(1,128)}', space=vmem, size = 0x12000, scoped, tag = 'internal scratch']
  %s0 = inlined_call_operand.hbm [shape: f32[8,16], index: 0, kind: input, shape index: {}]
  %s1 = inlined_call_operand.hbm [shape: f32[16,1024], index: 1, kind: input, shape index: {}]
  %s2 = inlined_call_operand.hbm [shape: f32[1,1024], index: 2, kind: input, shape index: {}]
  %s3 = inlined_call_operand.vmem [shape: f32[1,1024], index: 3, kind: input, shape index: {}]
  %s4 = inlined_call_operand.hbm [shape: f32[1,1024], index: 4, kind: input, shape index: {}]
  %s5 = inlined_call_operand.hbm [shape: bf16[1024,128], index: 5, kind: input, shape index: {}]
  %s6 = inlined_call_operand.vmem [shape: f32[1,128], index: 6, kind: input, shape index: {}]
  %s7 = inlined_call_operand.vmem [shape: f32[8,64], index: 7, kind: input, shape index: {}]
  %s8 = inlined_call_operand.hbm [shape: f32[8,64], index: 8, kind: output, shape index: {0}]
  %s9 = inlined_call_operand.hbm [shape: f32[8,128], index: 9, kind: output, shape index: {1}]
  %10 = xla_tuple %s8, %s9
  %s11 = sld [smem:[#allocation0]]
  $region70: #{tpu_custom_call.1} parent=0
    _
  %s13 = ssub.s32 1, %s11
  %s14 = scalar_select 0, %s13, %s11
  $region1: #{tpu_custom_call.1} parent=0
    #allocation2 [shape = 'u8[4096]{0}', space=vmem, size = 0x1000, scoped, tag = 'input window, operand 0, single buffered']
    #allocation3 [shape = 's32[1]{0}', space=sflag, size = 0x4, scoped, tag = 'scoped memory for tpu_custom_call.1']
    #allocation4 [shape = 's32[1]{0}', space=sflag, size = 0x4, scoped, tag = 'scoped memory for tpu_custom_call.1']
    #allocation5 [shape = 'u8[65536]{0}', space=vmem, size = 0x10000, scoped, tag = 'input window, operand 1, single buffered']
    #allocation6 [shape = 's32[1]{0}', space=sflag, size = 0x4, scoped, tag = 'scoped memory for tpu_custom_call.1']
    #allocation7 [shape = 'u8[4096]{0}', space=vmem, size = 0x1000, scoped, tag = 'input window, operand 2, single buffered']
    #allocation8 [shape = 'u8[4096]{0}', space=vmem, size = 0x1000, scoped, tag = 'input window, operand 4, single buffered']
    #allocation9 [shape = 's32[1]{0}', space=sflag, size = 0x4, scoped, tag = 'scoped memory for tpu_custom_call.1']
    #allocation10 [shape = 'u8[262144]{0}', space=vmem, size = 0x40000, scoped, tag = 'input window, operand 5, single buffered']
    #allocation11 [shape = 'u8[4096]{0}', space=vmem, size = 0x1000, scoped, tag = 'output window, operand 0, single buffered']
    #allocation12 [shape = 'u8[4096]{0}', space=vmem, size = 0x1000, scoped, tag = 'output window, operand 1, single buffered']
    #allocation13 [shape = 's32[1]{0}', space=sflag, size = 0x4, scoped, tag = 'scoped memory for tpu_custom_call.1']
    %15 = vsyncpa [#allocation3], 0
    %16 = vsyncpa [#allocation6], 0
    %17 = vsyncpa [#allocation9], 0
    %18 = vsyncpa [#allocation4], 0
    %19 = vsyncpa [#allocation13], 0
    // Predicated region
    $region2: #{tpu_custom_call.1} parent=1 // pred_check
      _
    $region3: #{tpu_custom_call.1} parent=1 // pred_check_branch
      %21 = sbr.rel (0) target = $region5
    $region4: #{tpu_custom_call.1} parent=1 // pred_region
      %s23 = ssub.s32 128, 128
      %24 = vsyncadd [#allocation3], %s23
      %s26 = sshll.u32 [#allocation2], 4
      %s27 = int_to_ptr.vmem [resolvable:$true] %s26
      %29 = dma.hbm_to_vmem [thread:$0]  %s0, 128, %s27, [#allocation3]
    $region5: #{tpu_custom_call.1} parent=1 // pred_fallthru
      _
    // Predicated region
    $region6: #{tpu_custom_call.1} parent=1 // pred_check
      _
    $region7: #{tpu_custom_call.1} parent=1 // pred_check_branch
      %31 = sbr.rel (0) target = $region9
    $region8: #{tpu_custom_call.1} parent=1 // pred_region
      %s33 = ssub.s32 2048, 2048
      %34 = vsyncadd [#allocation6], %s33
      %s35 = sshll.u32 [#allocation5], 4
      %s36 = int_to_ptr.vmem [resolvable:$true] %s35
      %41 = dma.hbm_to_vmem [thread:$0]  %s1, 2048, %s36, [#allocation6], 1024, 1024, 64
    $region9: #{tpu_custom_call.1} parent=1 // pred_fallthru
      _
    // Predicated region
    $region10: #{tpu_custom_call.1} parent=1 // pred_check
      _
    $region11: #{tpu_custom_call.1} parent=1 // pred_check_branch
      %43 = sbr.rel (0) target = $region13
    $region12: #{tpu_custom_call.1} parent=1 // pred_region
      %s45 = ssub.s32 128, 128
      %46 = vsyncadd [#allocation6], %s45
      %s48 = sshll.u32 [#allocation7], 4
      %s49 = int_to_ptr.vmem [resolvable:$true] %s48
      %51 = dma.hbm_to_vmem [thread:$0]  %s2, 128, %s49, [#allocation6]
    $region13: #{tpu_custom_call.1} parent=1 // pred_fallthru
      _
    // Predicated region
    $region14: #{tpu_custom_call.1} parent=1 // pred_check
      _
    $region15: #{tpu_custom_call.1} parent=1 // pred_check_branch
      %53 = sbr.rel (0) target = $region17
    $region16: #{tpu_custom_call.1} parent=1 // pred_region
      _
    $region17: #{tpu_custom_call.1} parent=1 // pred_fallthru
      _
    // Predicated region
    $region18: #{tpu_custom_call.1} parent=1 // pred_check
      _
    $region19: #{tpu_custom_call.1} parent=1 // pred_check_branch
      %55 = sbr.rel (0) target = $region21
    $region20: #{tpu_custom_call.1} parent=1 // pred_region
      %s57 = ssub.s32 128, 128
      %58 = vsyncadd [#allocation9], %s57
      %s60 = sshll.u32 [#allocation8], 4
      %s61 = int_to_ptr.vmem [resolvable:$true] %s60
      %63 = dma.hbm_to_vmem [thread:$0]  %s4, 128, %s61, [#allocation9]
    $region21: #{tpu_custom_call.1} parent=1 // pred_fallthru
      _
    // Predicated region
    $region22: #{tpu_custom_call.1} parent=1 // pred_check
      _
    $region23: #{tpu_custom_call.1} parent=1 // pred_check_branch
      %65 = sbr.rel (0) target = $region25
    $region24: #{tpu_custom_call.1} parent=1 // pred_region
      %s67 = ssub.s32 8192, 8192
      %68 = vsyncadd [#allocation9], %s67
      %s69 = sshll.u32 [#allocation10], 4
      %s70 = int_to_ptr.vmem [resolvable:$true] %s69
      %75 = dma.hbm_to_vmem [thread:$0]  %s5, 8192, %s70, [#allocation9], 64, 64, 4
    $region25: #{tpu_custom_call.1} parent=1 // pred_fallthru
      _
    // Predicated region
    $region26: #{tpu_custom_call.1} parent=1 // pred_check
      _
    $region27: #{tpu_custom_call.1} parent=1 // pred_check_branch
      %77 = sbr.rel (0) target = $region29
    $region28: #{tpu_custom_call.1} parent=1 // pred_region
      _
    $region29: #{tpu_custom_call.1} parent=1 // pred_fallthru
      _
    // Predicated region
    $region30: #{tpu_custom_call.1} parent=1 // pred_check
      _
    $region31: #{tpu_custom_call.1} parent=1 // pred_check_branch
      %79 = sbr.rel (0) target = $region33
    $region32: #{tpu_custom_call.1} parent=1 // pred_region
      _
    $region33: #{tpu_custom_call.1} parent=1 // pred_fallthru
      _
    // Predicated region
    $region34: #{tpu_custom_call.1} parent=1 // pred_check
      _
    $region35: #{tpu_custom_call.1} parent=1 // pred_check_branch
      %81 = sbr.rel (0) target = $region37
    $region36: #{tpu_custom_call.1} parent=1 // pred_region
      %82 = dma.done [#allocation3], 128
    $region37: #{tpu_custom_call.1} parent=1 // pred_fallthru
      _
    // Predicated region
    $region38: #{tpu_custom_call.1} parent=1 // pred_check
      _
    $region39: #{tpu_custom_call.1} parent=1 // pred_check_branch
      %84 = sbr.rel (0) target = $region41
    $region40: #{tpu_custom_call.1} parent=1 // pred_region
      %85 = dma.done [#allocation6], 2048
    $region41: #{tpu_custom_call.1} parent=1 // pred_fallthru
      _
    // Predicated region
    $region42: #{tpu_custom_call.1} parent=1 // pred_check
      _
    $region43: #{tpu_custom_call.1} parent=1 // pred_check_branch
      %87 = sbr.rel (0) target = $region45
    $region44: #{tpu_custom_call.1} parent=1 // pred_region
      %88 = dma.done [#allocation6], 128
    $region45: #{tpu_custom_call.1} parent=1 // pred_fallthru
      _
    // Predicated region
    $region46: #{tpu_custom_call.1} parent=1 // pred_check
      _
    $region47: #{tpu_custom_call.1} parent=1 // pred_check_branch
      %90 = sbr.rel (0) target = $region49
    $region48: #{tpu_custom_call.1} parent=1 // pred_region
      %91 = dma.done [#allocation9], 128
    $region49: #{tpu_custom_call.1} parent=1 // pred_fallthru
      _
    // Predicated region
    $region50: #{tpu_custom_call.1} parent=1 // pred_check
      _
    $region51: #{tpu_custom_call.1} parent=1 // pred_check_branch
      %93 = sbr.rel (0) target = $region53
    $region52: #{tpu_custom_call.1} parent=1 // pred_region
      %94 = dma.done [#allocation9], 8192
    $region53: #{tpu_custom_call.1} parent=1 // pred_fallthru
      _
    %v96 = vld [vmem:[#allocation2] sm:$0xff]
    %v97 = vld [vmem:[#allocation5] sm:$0xff]
    %v98 = vld [vmem:[#allocation5 + $0x8] sm:$0xff]
    %v99 = vld [vmem:[#allocation5 + $0x10] sm:$0xff]
    %v100 = vld [vmem:[#allocation5 + $0x18] sm:$0xff]
    %v101 = vld [vmem:[#allocation5 + $0x20] sm:$0xff]
    %v102 = vld [vmem:[#allocation5 + $0x28] sm:$0xff]
    %v103 = vld [vmem:[#allocation5 + $0x30] sm:$0xff]
    %v104 = vld [vmem:[#allocation5 + $0x38] sm:$0xff]
    %v105 = vld [vmem:[#allocation5 + $0x40] sm:$0xff]
    %v106 = vld [vmem:[#allocation5 + $0x48] sm:$0xff]
    %v107 = vld [vmem:[#allocation5 + $0x50] sm:$0xff]
    %v108 = vld [vmem:[#allocation5 + $0x58] sm:$0xff]
    %v109 = vld [vmem:[#allocation5 + $0x60] sm:$0xff]
    %v110 = vld [vmem:[#allocation5 + $0x68] sm:$0xff]
    %v111 = vld [vmem:[#allocation5 + $0x70] sm:$0xff]
    %v112 = vld [vmem:[#allocation5 + $0x78] sm:$0xff]
    %v113 = vld [vmem:[#allocation7] sm:$0xff]
    %v115 = vlaneseq
    %v116 = vshrl.u32 %v115, 7
    %v117 = vsub.s32 0, %v116
    %v118 = vrot.slane %v113, %v117
    %v119 = vlaneseq
    %v120 = vshrl.u32 %v119, 7
    %v121 = vsub.s32 1, %v120
    %v122 = vrot.slane %v113, %v121
    %v123 = vlaneseq
    %v124 = vshrl.u32 %v123, 7
    %v125 = vsub.s32 2, %v124
    %v126 = vrot.slane %v113, %v125
    %v127 = vlaneseq
    %v128 = vshrl.u32 %v127, 7
    %v129 = vsub.s32 3, %v128
    %v130 = vrot.slane %v113, %v129
    %v131 = vlaneseq
    %v132 = vshrl.u32 %v131, 7
    %v133 = vsub.s32 4, %v132
    %v134 = vrot.slane %v113, %v133
    %v135 = vlaneseq
    %v136 = vshrl.u32 %v135, 7
    %v137 = vsub.s32 5, %v136
    %v138 = vrot.slane %v113, %v137
    %v139 = vlaneseq
    %v140 = vshrl.u32 %v139, 7
    %v141 = vsub.s32 6, %v140
    %v142 = vrot.slane %v113, %v141
    %v143 = vlaneseq
    %v144 = vshrl.u32 %v143, 7
    %v145 = vsub.s32 7, %v144
    %v146 = vrot.slane %v113, %v145
    %vm155 = vcmask 130048
    %v157 = vsel %vm155, %v96, 0
    %159 = vmatprep.subr.mxu0 %v98
    %160 = vmatpush1.msra.mxu0 %v97
    %161 = vmatprep.subr.mxu0 %v106
    %162 = vmatpush1.msra.mxu0 %v105
    %163 = vmatprep.subr.mxu0 0.0
    %164 = vmatpush1.msra.mxu0 0.0
    %165 = vmatprep.subr.mxu0 0.0
    %166 = vmatpush1.msra.mxu0 0.0
    %167 = vmatprep.subr.mxu0 0.0
    %168 = vmatpush1.msra.mxu0 0.0
    %169 = vmatprep.subr.mxu0 0.0
    %170 = vmatpush1.msra.mxu0 0.0
    %171 = vmatprep.subr.mxu0 0.0
    %172 = vmatpush1.msra.mxu0 0.0
    %173 = vmatprep.subr.mxu0 0.0
    %174 = vmatpush1.msra.mxu0 0.0
    %175 = vmatprep.subr.mxu0 0.0
    %176 = vmatpush1.msra.mxu0 0.0
    %177 = vmatprep.subr.mxu0 0.0
    %178 = vmatpush1.msra.mxu0 0.0
    %179 = vmatprep.subr.mxu0 0.0
    %180 = vmatpush1.msra.mxu0 0.0
    %181 = vmatprep.subr.mxu0 0.0
    %182 = vmatpush1.msra.mxu0 0.0
    %183 = vmatprep.subr.mxu0 0.0
    %184 = vmatpush1.msra.mxu0 0.0
    %185 = vmatprep.subr.mxu0 0.0
    %186 = vmatpush1.msra.mxu0 0.0
    %187 = vmatprep.subr.mxu0 0.0
    %188 = vmatpush1.msra.mxu0 0.0
    %189 = vmatprep.subr.mxu0 0.0
    %190 = vmatpush1.msra.mxu0 0.0
    %191 = vmatprep.subr.mxu0 0.0
    %192 = vmatpush1.msra.mxu0 0.0
    %193 = vmatprep.subr.mxu0 0.0
    %194 = vmatpush1.msra.mxu0 0.0
    %195 = vmatprep.subr.mxu0 0.0
    %196 = vmatpush1.msra.mxu0 0.0
    %197 = vmatprep.subr.mxu0 0.0
    %198 = vmatpush1.msra.mxu0 0.0
    %199 = vmatprep.subr.mxu0 0.0
    %200 = vmatpush1.msra.mxu0 0.0
    %201 = vmatprep.subr.mxu0 0.0
    %202 = vmatpush1.msra.mxu0 0.0
    %203 = vmatprep.subr.mxu0 0.0
    %204 = vmatpush1.msra.mxu0 0.0
    %205 = vmatprep.subr.mxu0 0.0
    %206 = vmatpush1.msra.mxu0 0.0
    %207 = vmatprep.subr.mxu0 0.0
    %208 = vmatpush1.msra.mxu0 0.0
    %209 = vmatprep.subr.mxu0 0.0
    %210 = vmatpush1.msra.mxu0 0.0
    %211 = vmatprep.subr.mxu0 0.0
    %212 = vmatpush1.msra.mxu0 0.0
    %213 = vmatprep.subr.mxu0 0.0
    %214 = vmatpush1.msra.mxu0 0.0
    %215 = vmatprep.subr.mxu0 0.0
    %216 = vmatpush1.msra.mxu0 0.0
    %217 = vmatprep.subr.mxu0 0.0
    %218 = vmatpush1.msra.mxu0 0.0
    %219 = vmatprep.subr.mxu0 0.0
    %220 = vmatpush1.msra.mxu0 0.0
    %221 = vmatprep.subr.mxu0 0.0
    %222 = vmatpush1.msra.mxu0 0.0
    %223 = vmatprep.mubr.f32.mxu0 0.0
    %224 = vmatmul.mubr.f32.gmra.mrb[0].mxu0 %v157
    %v225 = vpop.f32.mrb[0].mxu0
    %v226 = vadd.f32 %v118, %v225
    %v227 = vpop.f32.mrb[0].mxu0
    %v228 = vadd.f32 %v122, %v227
    %229 = vdwg.mxu0
    %230 = vmatprep.subr.mxu0 %v100
    %231 = vmatpush1.msra.mxu0 %v99
    %232 = vmatprep.subr.mxu0 %v108
    %233 = vmatpush1.msra.mxu0 %v107
    %234 = vmatprep.subr.mxu0 0.0
    %235 = vmatpush1.msra.mxu0 0.0
    %236 = vmatprep.subr.mxu0 0.0
    %237 = vmatpush1.msra.mxu0 0.0
    %238 = vmatprep.subr.mxu0 0.0
    %239 = vmatpush1.msra.mxu0 0.0
    %240 = vmatprep.subr.mxu0 0.0
    %241 = vmatpush1.msra.mxu0 0.0
    %242 = vmatprep.subr.mxu0 0.0
    %243 = vmatpush1.msra.mxu0 0.0
    %244 = vmatprep.subr.mxu0 0.0
    %245 = vmatpush1.msra.mxu0 0.0
    %246 = vmatprep.subr.mxu0 0.0
    %247 = vmatpush1.msra.mxu0 0.0
    %248 = vmatprep.subr.mxu0 0.0
    %249 = vmatpush1.msra.mxu0 0.0
    %250 = vmatprep.subr.mxu0 0.0
    %251 = vmatpush1.msra.mxu0 0.0
    %252 = vmatprep.subr.mxu0 0.0
    %253 = vmatpush1.msra.mxu0 0.0
    %254 = vmatprep.subr.mxu0 0.0
    %255 = vmatpush1.msra.mxu0 0.0
    %256 = vmatprep.subr.mxu0 0.0
    %257 = vmatpush1.msra.mxu0 0.0
    %258 = vmatprep.subr.mxu0 0.0
    %259 = vmatpush1.msra.mxu0 0.0
    %260 = vmatprep.subr.mxu0 0.0
    %261 = vmatpush1.msra.mxu0 0.0
    %262 = vmatprep.subr.mxu0 0.0
    %263 = vmatpush1.msra.mxu0 0.0
    %264 = vmatprep.subr.mxu0 0.0
    %265 = vmatpush1.msra.mxu0 0.0
    %266 = vmatprep.subr.mxu0 0.0
    %267 = vmatpush1.msra.mxu0 0.0
    %268 = vmatprep.subr.mxu0 0.0
    %269 = vmatpush1.msra.mxu0 0.0
    %270 = vmatprep.subr.mxu0 0.0
    %271 = vmatpush1.msra.mxu0 0.0
    %272 = vmatprep.subr.mxu0 0.0
    %273 = vmatpush1.msra.mxu0 0.0
    %274 = vmatprep.subr.mxu0 0.0
    %275 = vmatpush1.msra.mxu0 0.0
    %276 = vmatprep.subr.mxu0 0.0
    %277 = vmatpush1.msra.mxu0 0.0
    %278 = vmatprep.subr.mxu0 0.0
    %279 = vmatpush1.msra.mxu0 0.0
    %280 = vmatprep.subr.mxu0 0.0
    %281 = vmatpush1.msra.mxu0 0.0
    %282 = vmatprep.subr.mxu0 0.0
    %283 = vmatpush1.msra.mxu0 0.0
    %284 = vmatprep.subr.mxu0 0.0
    %285 = vmatpush1.msra.mxu0 0.0
    %286 = vmatprep.subr.mxu0 0.0
    %287 = vmatpush1.msra.mxu0 0.0
    %288 = vmatprep.subr.mxu0 0.0
    %289 = vmatpush1.msra.mxu0 0.0
    %290 = vmatprep.subr.mxu0 0.0
    %291 = vmatpush1.msra.mxu0 0.0
    %292 = vmatprep.subr.mxu0 0.0
    %293 = vmatpush1.msra.mxu0 0.0
    %294 = vmatprep.mubr.f32.mxu0 0.0
    %295 = vmatmul.mubr.f32.gmra.mrb[0].mxu0 %v157
    %v296 = vpop.f32.mrb[0].mxu0
    %v297 = vadd.f32 %v126, %v296
    %v298 = vpop.f32.mrb[0].mxu0
    %v299 = vadd.f32 %v130, %v298
    %300 = vdwg.mxu0
    %301 = vmatprep.subr.mxu0 %v102
    %302 = vmatpush1.msra.mxu0 %v101
    %303 = vmatprep.subr.mxu0 %v110
    %304 = vmatpush1.msra.mxu0 %v109
    %305 = vmatprep.subr.mxu0 0.0
    %306 = vmatpush1.msra.mxu0 0.0
    %307 = vmatprep.subr.mxu0 0.0
    %308 = vmatpush1.msra.mxu0 0.0
    %309 = vmatprep.subr.mxu0 0.0
    %310 = vmatpush1.msra.mxu0 0.0
    %311 = vmatprep.subr.mxu0 0.0
    %312 = vmatpush1.msra.mxu0 0.0
    %313 = vmatprep.subr.mxu0 0.0
    %314 = vmatpush1.msra.mxu0 0.0
    %315 = vmatprep.subr.mxu0 0.0
    %316 = vmatpush1.msra.mxu0 0.0
    %317 = vmatprep.subr.mxu0 0.0
    %318 = vmatpush1.msra.mxu0 0.0
    %319 = vmatprep.subr.mxu0 0.0
    %320 = vmatpush1.msra.mxu0 0.0
    %321 = vmatprep.subr.mxu0 0.0
    %322 = vmatpush1.msra.mxu0 0.0
    %323 = vmatprep.subr.mxu0 0.0
    %324 = vmatpush1.msra.mxu0 0.0
    %325 = vmatprep.subr.mxu0 0.0
    %326 = vmatpush1.msra.mxu0 0.0
    %327 = vmatprep.subr.mxu0 0.0
    %328 = vmatpush1.msra.mxu0 0.0
    %329 = vmatprep.subr.mxu0 0.0
    %330 = vmatpush1.msra.mxu0 0.0
    %331 = vmatprep.subr.mxu0 0.0
    %332 = vmatpush1.msra.mxu0 0.0
    %333 = vmatprep.subr.mxu0 0.0
    %334 = vmatpush1.msra.mxu0 0.0
    %335 = vmatprep.subr.mxu0 0.0
    %336 = vmatpush1.msra.mxu0 0.0
    %337 = vmatprep.subr.mxu0 0.0
    %338 = vmatpush1.msra.mxu0 0.0
    %339 = vmatprep.subr.mxu0 0.0
    %340 = vmatpush1.msra.mxu0 0.0
    %341 = vmatprep.subr.mxu0 0.0
    %342 = vmatpush1.msra.mxu0 0.0
    %343 = vmatprep.subr.mxu0 0.0
    %344 = vmatpush1.msra.mxu0 0.0
    %345 = vmatprep.subr.mxu0 0.0
    %346 = vmatpush1.msra.mxu0 0.0
    %347 = vmatprep.subr.mxu0 0.0
    %348 = vmatpush1.msra.mxu0 0.0
    %349 = vmatprep.subr.mxu0 0.0
    %350 = vmatpush1.msra.mxu0 0.0
    %351 = vmatprep.subr.mxu0 0.0
    %352 = vmatpush1.msra.mxu0 0.0
    %353 = vmatprep.subr.mxu0 0.0
    %354 = vmatpush1.msra.mxu0 0.0
    %355 = vmatprep.subr.mxu0 0.0
    %356 = vmatpush1.msra.mxu0 0.0
    %357 = vmatprep.subr.mxu0 0.0
    %358 = vmatpush1.msra.mxu0 0.0
    %359 = vmatprep.subr.mxu0 0.0
    %360 = vmatpush1.msra.mxu0 0.0
    %361 = vmatprep.subr.mxu0 0.0
    %362 = vmatpush1.msra.mxu0 0.0
    %363 = vmatprep.subr.mxu0 0.0
    %364 = vmatpush1.msra.mxu0 0.0
    %365 = vmatprep.mubr.f32.mxu0 0.0
    %366 = vmatmul.mubr.f32.gmra.mrb[0].mxu0 %v157
    %v367 = vpop.f32.mrb[0].mxu0
    %v368 = vadd.f32 %v134, %v367
    %v369 = vpop.f32.mrb[0].mxu0
    %v370 = vadd.f32 %v138, %v369
    %371 = vdwg.mxu0
    %372 = vmatprep.subr.mxu0 %v104
    %373 = vmatpush1.msra.mxu0 %v103
    %374 = vmatprep.subr.mxu0 %v112
    %375 = vmatpush1.msra.mxu0 %v111
    %376 = vmatprep.subr.mxu0 0.0
    %377 = vmatpush1.msra.mxu0 0.0
    %378 = vmatprep.subr.mxu0 0.0
    %379 = vmatpush1.msra.mxu0 0.0
    %380 = vmatprep.subr.mxu0 0.0
    %381 = vmatpush1.msra.mxu0 0.0
    %382 = vmatprep.subr.mxu0 0.0
    %383 = vmatpush1.msra.mxu0 0.0
    %384 = vmatprep.subr.mxu0 0.0
    %385 = vmatpush1.msra.mxu0 0.0
    %386 = vmatprep.subr.mxu0 0.0
    %387 = vmatpush1.msra.mxu0 0.0
    %388 = vmatprep.subr.mxu0 0.0
    %389 = vmatpush1.msra.mxu0 0.0
    %390 = vmatprep.subr.mxu0 0.0
    %391 = vmatpush1.msra.mxu0 0.0
    %392 = vmatprep.subr.mxu0 0.0
    %393 = vmatpush1.msra.mxu0 0.0
    %394 = vmatprep.subr.mxu0 0.0
    %395 = vmatpush1.msra.mxu0 0.0
    %396 = vmatprep.subr.mxu0 0.0
    %397 = vmatpush1.msra.mxu0 0.0
    %398 = vmatprep.subr.mxu0 0.0
    %399 = vmatpush1.msra.mxu0 0.0
    %400 = vmatprep.subr.mxu0 0.0
    %401 = vmatpush1.msra.mxu0 0.0
    %402 = vmatprep.subr.mxu0 0.0
    %403 = vmatpush1.msra.mxu0 0.0
    %404 = vmatprep.subr.mxu0 0.0
    %405 = vmatpush1.msra.mxu0 0.0
    %406 = vmatprep.subr.mxu0 0.0
    %407 = vmatpush1.msra.mxu0 0.0
    %408 = vmatprep.subr.mxu0 0.0
    %409 = vmatpush1.msra.mxu0 0.0
    %410 = vmatprep.subr.mxu0 0.0
    %411 = vmatpush1.msra.mxu0 0.0
    %412 = vmatprep.subr.mxu0 0.0
    %413 = vmatpush1.msra.mxu0 0.0
    %414 = vmatprep.subr.mxu0 0.0
    %415 = vmatpush1.msra.mxu0 0.0
    %416 = vmatprep.subr.mxu0 0.0
    %417 = vmatpush1.msra.mxu0 0.0
    %418 = vmatprep.subr.mxu0 0.0
    %419 = vmatpush1.msra.mxu0 0.0
    %420 = vmatprep.subr.mxu0 0.0
    %421 = vmatpush1.msra.mxu0 0.0
    %422 = vmatprep.subr.mxu0 0.0
    %423 = vmatpush1.msra.mxu0 0.0
    %424 = vmatprep.subr.mxu0 0.0
    %425 = vmatpush1.msra.mxu0 0.0
    %426 = vmatprep.subr.mxu0 0.0
    %427 = vmatpush1.msra.mxu0 0.0
    %428 = vmatprep.subr.mxu0 0.0
    %429 = vmatpush1.msra.mxu0 0.0
    %430 = vmatprep.subr.mxu0 0.0
    %431 = vmatpush1.msra.mxu0 0.0
    %432 = vmatprep.subr.mxu0 0.0
    %433 = vmatpush1.msra.mxu0 0.0
    %434 = vmatprep.subr.mxu0 0.0
    %435 = vmatpush1.msra.mxu0 0.0
    %436 = vmatprep.mubr.f32.mxu0 0.0
    %437 = vmatmul.mubr.f32.gmra.mrb[0].mxu0 %v157
    %v438 = vpop.f32.mrb[0].mxu0
    %v439 = vadd.f32 %v142, %v438
    %v440 = vpop.f32.mrb[0].mxu0
    %v441 = vadd.f32 %v146, %v440
    %442 = vdwg.mxu0
    %v443 = vrot.slane %v226, 4
    %v444 = vadd.f32 %v226, %v443
    %v445 = vrot.slane %v444, 2
    %v446 = vadd.f32 %v444, %v445
    %v447 = vrot.slane %v446, 1
    %v448 = vadd.f32 %v446, %v447
    %v449 = vrot.slane %v228, 4
    %v450 = vadd.f32 %v228, %v449
    %v451 = vrot.slane %v450, 2
    %v452 = vadd.f32 %v450, %v451
    %v453 = vrot.slane %v452, 1
    %v454 = vadd.f32 %v452, %v453
    %v455 = vrot.slane %v297, 4
    %v456 = vadd.f32 %v297, %v455
    %v457 = vrot.slane %v456, 2
    %v458 = vadd.f32 %v456, %v457
    %v459 = vrot.slane %v458, 1
    %v460 = vadd.f32 %v458, %v459
    %v461 = vrot.slane %v299, 4
    %v462 = vadd.f32 %v299, %v461
    %v463 = vrot.slane %v462, 2
    %v464 = vadd.f32 %v462, %v463
    %v465 = vrot.slane %v464, 1
    %v466 = vadd.f32 %v464, %v465
    %v467 = vrot.slane %v368, 4
    %v468 = vadd.f32 %v368, %v467
    %v469 = vrot.slane %v468, 2
    %v470 = vadd.f32 %v468, %v469
    %v471 = vrot.slane %v470, 1
    %v472 = vadd.f32 %v470, %v471
    %v473 = vrot.slane %v370, 4
    %v474 = vadd.f32 %v370, %v473
    %v475 = vrot.slane %v474, 2
    %v476 = vadd.f32 %v474, %v475
    %v477 = vrot.slane %v476, 1
    %v478 = vadd.f32 %v476, %v477
    %v479 = vrot.slane %v439, 4
    %v480 = vadd.f32 %v439, %v479
    %v481 = vrot.slane %v480, 2
    %v482 = vadd.f32 %v480, %v481
    %v483 = vrot.slane %v482, 1
    %v484 = vadd.f32 %v482, %v483
    %v485 = vrot.slane %v441, 4
    %v486 = vadd.f32 %v441, %v485
    %v487 = vrot.slane %v486, 2
    %v488 = vadd.f32 %v486, %v487
    %v489 = vrot.slane %v488, 1
    %v490 = vadd.f32 %v488, %v489
    %v491 = vrcp.pop 8.0
    %v492 = vmul.f32 %v448, %v491
    %v493 = vmul.f32 %v454, %v491
    %v494 = vmul.f32 %v460, %v491
    %v495 = vmul.f32 %v466, %v491
    %v496 = vmul.f32 %v472, %v491
    %v497 = vmul.f32 %v478, %v491
    %v498 = vmul.f32 %v484, %v491
    %v499 = vmul.f32 %v490, %v491
    %v500 = vsub.f32 %v226, %v492
    %v501 = vsub.f32 %v228, %v493
    %v502 = vsub.f32 %v297, %v494
    %v503 = vsub.f32 %v299, %v495
    %v504 = vsub.f32 %v368, %v496
    %v505 = vsub.f32 %v370, %v497
    %v506 = vsub.f32 %v439, %v498
    %v507 = vsub.f32 %v441, %v499
    %v508 = vmul.f32 %v500, %v500
    %v509 = vmul.f32 %v501, %v501
    %v510 = vmul.f32 %v502, %v502
    %v511 = vmul.f32 %v503, %v503
    %v512 = vmul.f32 %v504, %v504
    %v513 = vmul.f32 %v505, %v505
    %v514 = vmul.f32 %v506, %v506
    %v515 = vmul.f32 %v507, %v507
    %v516 = vrot.slane %v508, 4
    %v517 = vadd.f32 %v508, %v516
    %v518 = vrot.slane %v517, 2
    %v519 = vadd.f32 %v517, %v518
    %v520 = vrot.slane %v519, 1
    %v521 = vadd.f32 %v519, %v520
    %v522 = vrot.slane %v509, 4
    %v523 = vadd.f32 %v509, %v522
    %v524 = vrot.slane %v523, 2
    %v525 = vadd.f32 %v523, %v524
    %v526 = vrot.slane %v525, 1
    %v527 = vadd.f32 %v525, %v526
    %v528 = vrot.slane %v510, 4
    %v529 = vadd.f32 %v510, %v528
    %v530 = vrot.slane %v529, 2
    %v531 = vadd.f32 %v529, %v530
    %v532 = vrot.slane %v531, 1
    %v533 = vadd.f32 %v531, %v532
    %v534 = vrot.slane %v511, 4
    %v535 = vadd.f32 %v511, %v534
    %v536 = vrot.slane %v535, 2
    %v537 = vadd.f32 %v535, %v536
    %v538 = vrot.slane %v537, 1
    %v539 = vadd.f32 %v537, %v538
    %v540 = vrot.slane %v512, 4
    %v541 = vadd.f32 %v512, %v540
    %v542 = vrot.slane %v541, 2
    %v543 = vadd.f32 %v541, %v542
    %v544 = vrot.slane %v543, 1
    %v545 = vadd.f32 %v543, %v544
    %v546 = vrot.slane %v513, 4
    %v547 = vadd.f32 %v513, %v546
    %v548 = vrot.slane %v547, 2
    %v549 = vadd.f32 %v547, %v548
    %v550 = vrot.slane %v549, 1
    %v551 = vadd.f32 %v549, %v550
    %v552 = vrot.slane %v514, 4
    %v553 = vadd.f32 %v514, %v552
    %v554 = vrot.slane %v553, 2
    %v555 = vadd.f32 %v553, %v554
    %v556 = vrot.slane %v555, 1
    %v557 = vadd.f32 %v555, %v556
    %v558 = vrot.slane %v515, 4
    %v559 = vadd.f32 %v515, %v558
    %v560 = vrot.slane %v559, 2
    %v561 = vadd.f32 %v559, %v560
    %v562 = vrot.slane %v561, 1
    %v563 = vadd.f32 %v561, %v562
    %v564 = vmul.f32 %v521, %v491
    %v565 = vmul.f32 %v527, %v491
    %v566 = vmul.f32 %v533, %v491
    %v567 = vmul.f32 %v539, %v491
    %v568 = vmul.f32 %v545, %v491
    %v569 = vmul.f32 %v551, %v491
    %v570 = vmul.f32 %v557, %v491
    %v571 = vmul.f32 %v563, %v491
    %v572 = vadd.f32 %v564, 1e-05
    %v573 = vadd.f32 %v565, 1e-05
    %v574 = vadd.f32 %v566, 1e-05
    %v575 = vadd.f32 %v567, 1e-05
    %v576 = vadd.f32 %v568, 1e-05
    %v577 = vadd.f32 %v569, 1e-05
    %v578 = vadd.f32 %v570, 1e-05
    %v579 = vadd.f32 %v571, 1e-05
    %v580 = vrsqrt.pop %v572
    %v581 = vrsqrt.pop %v573
    %v582 = vrsqrt.pop %v574
    %v583 = vrsqrt.pop %v575
    %v584 = vrsqrt.pop %v576
    %v585 = vrsqrt.pop %v577
    %v586 = vrsqrt.pop %v578
    %v587 = vrsqrt.pop %v579
    %v588 = vmul.f32 %v500, %v580
    %v589 = vmul.f32 %v501, %v581
    %v590 = vmul.f32 %v502, %v582
    %v591 = vmul.f32 %v503, %v583
    %v592 = vmul.f32 %v504, %v584
    %v593 = vmul.f32 %v505, %v585
    %v594 = vmul.f32 %v506, %v586
    %v595 = vmul.f32 %v507, %v587
    %v596 = vld [vmem:[%s3] sm:$0xff]
    %v598 = vlaneseq
    %v599 = vshrl.u32 %v598, 7
    %v600 = vsub.s32 0, %v599
    %v601 = vrot.slane %v596, %v600
    %v602 = vlaneseq
    %v603 = vshrl.u32 %v602, 7
    %v604 = vsub.s32 1, %v603
    %v605 = vrot.slane %v596, %v604
    %v606 = vlaneseq
    %v607 = vshrl.u32 %v606, 7
    %v608 = vsub.s32 2, %v607
    %v609 = vrot.slane %v596, %v608
    %v610 = vlaneseq
    %v611 = vshrl.u32 %v610, 7
    %v612 = vsub.s32 3, %v611
    %v613 = vrot.slane %v596, %v612
    %v614 = vlaneseq
    %v615 = vshrl.u32 %v614, 7
    %v616 = vsub.s32 4, %v615
    %v617 = vrot.slane %v596, %v616
    %v618 = vlaneseq
    %v619 = vshrl.u32 %v618, 7
    %v620 = vsub.s32 5, %v619
    %v621 = vrot.slane %v596, %v620
    %v622 = vlaneseq
    %v623 = vshrl.u32 %v622, 7
    %v624 = vsub.s32 6, %v623
    %v625 = vrot.slane %v596, %v624
    %v626 = vlaneseq
    %v627 = vshrl.u32 %v626, 7
    %v628 = vsub.s32 7, %v627
    %v629 = vrot.slane %v596, %v628
    %v638 = vmul.f32 %v588, %v601
    %v639 = vmul.f32 %v589, %v605
    %v640 = vmul.f32 %v590, %v609
    %v641 = vmul.f32 %v591, %v613
    %v642 = vmul.f32 %v592, %v617
    %v643 = vmul.f32 %v593, %v621
    %v644 = vmul.f32 %v594, %v625
    %v645 = vmul.f32 %v595, %v629
    %v646 = vld [vmem:[#allocation8] sm:$0xff]
    %v648 = vlaneseq
    %v649 = vshrl.u32 %v648, 7
    %v650 = vsub.s32 0, %v649
    %v651 = vrot.slane %v646, %v650
    %v652 = vlaneseq
    %v653 = vshrl.u32 %v652, 7
    %v654 = vsub.s32 1, %v653
    %v655 = vrot.slane %v646, %v654
    %v656 = vlaneseq
    %v657 = vshrl.u32 %v656, 7
    %v658 = vsub.s32 2, %v657
    %v659 = vrot.slane %v646, %v658
    %v660 = vlaneseq
    %v661 = vshrl.u32 %v660, 7
    %v662 = vsub.s32 3, %v661
    %v663 = vrot.slane %v646, %v662
    %v664 = vlaneseq
    %v665 = vshrl.u32 %v664, 7
    %v666 = vsub.s32 4, %v665
    %v667 = vrot.slane %v646, %v666
    %v668 = vlaneseq
    %v669 = vshrl.u32 %v668, 7
    %v670 = vsub.s32 5, %v669
    %v671 = vrot.slane %v646, %v670
    %v672 = vlaneseq
    %v673 = vshrl.u32 %v672, 7
    %v674 = vsub.s32 6, %v673
    %v675 = vrot.slane %v646, %v674
    %v676 = vlaneseq
    %v677 = vshrl.u32 %v676, 7
    %v678 = vsub.s32 7, %v677
    %v679 = vrot.slane %v646, %v678
    %v688 = vadd.f32 %v638, %v651
    %v689 = vadd.f32 %v639, %v655
    %v690 = vadd.f32 %v640, %v659
    %v691 = vadd.f32 %v641, %v663
    %v692 = vadd.f32 %v642, %v667
    %v693 = vadd.f32 %v643, %v671
    %v694 = vadd.f32 %v644, %v675
    %v695 = vadd.f32 %v645, %v679
    %vm696 = vcmp.ge.f32.partialorder %v688, 0.0
    %vm697 = vcmp.ge.f32.partialorder %v689, 0.0
    %vm698 = vcmp.ge.f32.partialorder %v690, 0.0
    %vm699 = vcmp.ge.f32.partialorder %v691, 0.0
    %vm700 = vcmp.ge.f32.partialorder %v692, 0.0
    %vm701 = vcmp.ge.f32.partialorder %v693, 0.0
    %vm702 = vcmp.ge.f32.partialorder %v694, 0.0
    %vm703 = vcmp.ge.f32.partialorder %v695, 0.0
    %v704 = vmul.f32 %v688, 0.2
    %v705 = vmul.f32 %v689, 0.2
    %v706 = vmul.f32 %v690, 0.2
    %v707 = vmul.f32 %v691, 0.2
    %v708 = vmul.f32 %v692, 0.2
    %v709 = vmul.f32 %v693, 0.2
    %v710 = vmul.f32 %v694, 0.2
    %v711 = vmul.f32 %v695, 0.2
    %v712 = vsel %vm696, %v688, %v704
    %v713 = vsel %vm697, %v689, %v705
    %v714 = vsel %vm698, %v690, %v706
    %v715 = vsel %vm699, %v691, %v707
    %v716 = vsel %vm700, %v692, %v708
    %v717 = vsel %vm701, %v693, %v709
    %v718 = vsel %vm702, %v694, %v710
    %v719 = vsel %vm703, %v695, %v711
    %v720 = vpack.c.bf16 %v712, %v712
    %v721 = vpack.c.bf16 %v713, %v713
    %v722 = vpack.c.bf16 %v714, %v714
    %v723 = vpack.c.bf16 %v715, %v715
    %v724 = vpack.c.bf16 %v716, %v716
    %v725 = vpack.c.bf16 %v717, %v717
    %v726 = vpack.c.bf16 %v718, %v718
    %v727 = vpack.c.bf16 %v719, %v719
    %v728 = vld [vmem:[#allocation10] sm:$0xf]
    %v729 = vld [vmem:[#allocation10 + $0x4] sm:$0xf]
    %v730 = vld [vmem:[#allocation10 + $0x8] sm:$0xf]
    %v731 = vld [vmem:[#allocation10 + $0xc] sm:$0xf]
    %v732 = vld [vmem:[#allocation10 + $0x10] sm:$0xf]
    %v733 = vld [vmem:[#allocation10 + $0x14] sm:$0xf]
    %v734 = vld [vmem:[#allocation10 + $0x18] sm:$0xf]
    %v735 = vld [vmem:[#allocation10 + $0x1c] sm:$0xf]
    %v736 = vld [vmem:[#allocation10 + $0x20] sm:$0xf]
    %v737 = vld [vmem:[#allocation10 + $0x24] sm:$0xf]
    %v738 = vld [vmem:[#allocation10 + $0x28] sm:$0xf]
    %v739 = vld [vmem:[#allocation10 + $0x2c] sm:$0xf]
    %v740 = vld [vmem:[#allocation10 + $0x30] sm:$0xf]
    %v741 = vld [vmem:[#allocation10 + $0x34] sm:$0xf]
    %v742 = vld [vmem:[#allocation10 + $0x38] sm:$0xf]
    %v743 = vld [vmem:[#allocation10 + $0x3c] sm:$0xf]
    %v744 = vld [vmem:[#allocation10 + $0x40] sm:$0xf]
    %v745 = vld [vmem:[#allocation10 + $0x44] sm:$0xf]
    %v746 = vld [vmem:[#allocation10 + $0x48] sm:$0xf]
    %v747 = vld [vmem:[#allocation10 + $0x4c] sm:$0xf]
    %v748 = vld [vmem:[#allocation10 + $0x50] sm:$0xf]
    %v749 = vld [vmem:[#allocation10 + $0x54] sm:$0xf]
    %v750 = vld [vmem:[#allocation10 + $0x58] sm:$0xf]
    %v751 = vld [vmem:[#allocation10 + $0x5c] sm:$0xf]
    %v752 = vld [vmem:[#allocation10 + $0x60] sm:$0xf]
    %v753 = vld [vmem:[#allocation10 + $0x64] sm:$0xf]
    %v754 = vld [vmem:[#allocation10 + $0x68] sm:$0xf]
    %v755 = vld [vmem:[#allocation10 + $0x6c] sm:$0xf]
    %v756 = vld [vmem:[#allocation10 + $0x70] sm:$0xf]
    %v757 = vld [vmem:[#allocation10 + $0x74] sm:$0xf]
    %v758 = vld [vmem:[#allocation10 + $0x78] sm:$0xf]
    %v759 = vld [vmem:[#allocation10 + $0x7c] sm:$0xf]
    %v760 = vld [vmem:[#allocation10 + $0x80] sm:$0xf]
    %v761 = vld [vmem:[#allocation10 + $0x84] sm:$0xf]
    %v762 = vld [vmem:[#allocation10 + $0x88] sm:$0xf]
    %v763 = vld [vmem:[#allocation10 + $0x8c] sm:$0xf]
    %v764 = vld [vmem:[#allocation10 + $0x90] sm:$0xf]
    %v765 = vld [vmem:[#allocation10 + $0x94] sm:$0xf]
    %v766 = vld [vmem:[#allocation10 + $0x98] sm:$0xf]
    %v767 = vld [vmem:[#allocation10 + $0x9c] sm:$0xf]
    %v768 = vld [vmem:[#allocation10 + $0xa0] sm:$0xf]
    %v769 = vld [vmem:[#allocation10 + $0xa4] sm:$0xf]
    %v770 = vld [vmem:[#allocation10 + $0xa8] sm:$0xf]
    %v771 = vld [vmem:[#allocation10 + $0xac] sm:$0xf]
    %v772 = vld [vmem:[#allocation10 + $0xb0] sm:$0xf]
    %v773 = vld [vmem:[#allocation10 + $0xb4] sm:$0xf]
    %v774 = vld [vmem:[#allocation10 + $0xb8] sm:$0xf]
    %v775 = vld [vmem:[#allocation10 + $0xbc] sm:$0xf]
    %v776 = vld [vmem:[#allocation10 + $0xc0] sm:$0xf]
    %v777 = vld [vmem:[#allocation10 + $0xc4] sm:$0xf]
    %v778 = vld [vmem:[#allocation10 + $0xc8] sm:$0xf]
    %v779 = vld [vmem:[#allocation10 + $0xcc] sm:$0xf]
    %v780 = vld [vmem:[#allocation10 + $0xd0] sm:$0xf]
    %v781 = vld [vmem:[#allocation10 + $0xd4] sm:$0xf]
    %v782 = vld [vmem:[#allocation10 + $0xd8] sm:$0xf]
    %v783 = vld [vmem:[#allocation10 + $0xdc] sm:$0xf]
    %v784 = vld [vmem:[#allocation10 + $0xe0] sm:$0xf]
    %v785 = vld [vmem:[#allocation10 + $0xe4] sm:$0xf]
    %v786 = vld [vmem:[#allocation10 + $0xe8] sm:$0xf]
    %v787 = vld [vmem:[#allocation10 + $0xec] sm:$0xf]
    %v788 = vld [vmem:[#allocation10 + $0xf0] sm:$0xf]
    %v789 = vld [vmem:[#allocation10 + $0xf4] sm:$0xf]
    %v790 = vld [vmem:[#allocation10 + $0xf8] sm:$0xf]
    %v791 = vld [vmem:[#allocation10 + $0xfc] sm:$0xf]
    %v792 = vld [vmem:[#allocation10 + $0x100] sm:$0xf]
    %v793 = vld [vmem:[#allocation10 + $0x104] sm:$0xf]
    %v794 = vld [vmem:[#allocation10 + $0x108] sm:$0xf]
    %v795 = vld [vmem:[#allocation10 + $0x10c] sm:$0xf]
    %v796 = vld [vmem:[#allocation10 + $0x110] sm:$0xf]
    %v797 = vld [vmem:[#allocation10 + $0x114] sm:$0xf]
    %v798 = vld [vmem:[#allocation10 + $0x118] sm:$0xf]
    %v799 = vld [vmem:[#allocation10 + $0x11c] sm:$0xf]
    %v800 = vld [vmem:[#allocation10 + $0x120] sm:$0xf]
    %v801 = vld [vmem:[#allocation10 + $0x124] sm:$0xf]
    %v802 = vld [vmem:[#allocation10 + $0x128] sm:$0xf]
    %v803 = vld [vmem:[#allocation10 + $0x12c] sm:$0xf]
    %v804 = vld [vmem:[#allocation10 + $0x130] sm:$0xf]
    %v805 = vld [vmem:[#allocation10 + $0x134] sm:$0xf]
    %v806 = vld [vmem:[#allocation10 + $0x138] sm:$0xf]
    %v807 = vld [vmem:[#allocation10 + $0x13c] sm:$0xf]
    %v808 = vld [vmem:[#allocation10 + $0x140] sm:$0xf]
    %v809 = vld [vmem:[#allocation10 + $0x144] sm:$0xf]
    %v810 = vld [vmem:[#allocation10 + $0x148] sm:$0xf]
    %v811 = vld [vmem:[#allocation10 + $0x14c] sm:$0xf]
    %v812 = vld [vmem:[#allocation10 + $0x150] sm:$0xf]
    %v813 = vld [vmem:[#allocation10 + $0x154] sm:$0xf]
    %v814 = vld [vmem:[#allocation10 + $0x158] sm:$0xf]
    %v815 = vld [vmem:[#allocation10 + $0x15c] sm:$0xf]
    %v816 = vld [vmem:[#allocation10 + $0x160] sm:$0xf]
    %v817 = vld [vmem:[#allocation10 + $0x164] sm:$0xf]
    %v818 = vld [vmem:[#allocation10 + $0x168] sm:$0xf]
    %v819 = vld [vmem:[#allocation10 + $0x16c] sm:$0xf]
    %v820 = vld [vmem:[#allocation10 + $0x170] sm:$0xf]
    %v821 = vld [vmem:[#allocation10 + $0x174] sm:$0xf]
    %v822 = vld [vmem:[#allocation10 + $0x178] sm:$0xf]
    %v823 = vld [vmem:[#allocation10 + $0x17c] sm:$0xf]
    %v824 = vld [vmem:[#allocation10 + $0x180] sm:$0xf]
    %v825 = vld [vmem:[#allocation10 + $0x184] sm:$0xf]
    %v826 = vld [vmem:[#allocation10 + $0x188] sm:$0xf]
    %v827 = vld [vmem:[#allocation10 + $0x18c] sm:$0xf]
    %v828 = vld [vmem:[#allocation10 + $0x190] sm:$0xf]
    %v829 = vld [vmem:[#allocation10 + $0x194] sm:$0xf]
    %v830 = vld [vmem:[#allocation10 + $0x198] sm:$0xf]
    %v831 = vld [vmem:[#allocation10 + $0x19c] sm:$0xf]
    %v832 = vld [vmem:[#allocation10 + $0x1a0] sm:$0xf]
    %v833 = vld [vmem:[#allocation10 + $0x1a4] sm:$0xf]
    %v834 = vld [vmem:[#allocation10 + $0x1a8] sm:$0xf]
    %v835 = vld [vmem:[#allocation10 + $0x1ac] sm:$0xf]
    %v836 = vld [vmem:[#allocation10 + $0x1b0] sm:$0xf]
    %v837 = vld [vmem:[#allocation10 + $0x1b4] sm:$0xf]
    %v838 = vld [vmem:[#allocation10 + $0x1b8] sm:$0xf]
    %v839 = vld [vmem:[#allocation10 + $0x1bc] sm:$0xf]
    %v840 = vld [vmem:[#allocation10 + $0x1c0] sm:$0xf]
    %v841 = vld [vmem:[#allocation10 + $0x1c4] sm:$0xf]
    %v842 = vld [vmem:[#allocation10 + $0x1c8] sm:$0xf]
    %v843 = vld [vmem:[#allocation10 + $0x1cc] sm:$0xf]
    %v844 = vld [vmem:[#allocation10 + $0x1d0] sm:$0xf]
    %v845 = vld [vmem:[#allocation10 + $0x1d4] sm:$0xf]
    %v846 = vld [vmem:[#allocation10 + $0x1d8] sm:$0xf]
    %v847 = vld [vmem:[#allocation10 + $0x1dc] sm:$0xf]
    %v848 = vld [vmem:[#allocation10 + $0x1e0] sm:$0xf]
    %v849 = vld [vmem:[#allocation10 + $0x1e4] sm:$0xf]
    %v850 = vld [vmem:[#allocation10 + $0x1e8] sm:$0xf]
    %v851 = vld [vmem:[#allocation10 + $0x1ec] sm:$0xf]
    %v852 = vld [vmem:[#allocation10 + $0x1f0] sm:$0xf]
    %v853 = vld [vmem:[#allocation10 + $0x1f4] sm:$0xf]
    %v854 = vld [vmem:[#allocation10 + $0x1f8] sm:$0xf]
    %v855 = vld [vmem:[#allocation10 + $0x1fc] sm:$0xf]
    %v856 = vld [vmem:[%s6] sm:$0x1]
    %v858 = vlaneseq
    %v859 = vshrl.u32 %v858, 7
    %v860 = vsub.s32 0, %v859
    %v861 = vrot.slane %v856, %v860
    %v991 = vunpack.c.l.b16 %v728
    %v992 = vunpack.c.l.b16 %v729
    %v993 = vunpack.c.l.b16 %v730
    %v994 = vunpack.c.l.b16 %v731
    %v995 = vunpack.c.l.b16 %v732
    %v996 = vunpack.c.l.b16 %v733
    %v997 = vunpack.c.l.b16 %v734
    %v998 = vunpack.c.l.b16 %v735
    %v999 = vunpack.c.l.b16 %v736
    %v1000 = vunpack.c.l.b16 %v737
    %v1001 = vunpack.c.l.b16 %v738
    %v1002 = vunpack.c.l.b16 %v739
    %v1003 = vunpack.c.l.b16 %v740
    %v1004 = vunpack.c.l.b16 %v741
    %v1005 = vunpack.c.l.b16 %v742
    %v1006 = vunpack.c.l.b16 %v743
    %v1007 = vunpack.c.l.b16 %v744
    %v1008 = vunpack.c.l.b16 %v745
    %v1009 = vunpack.c.l.b16 %v746
    %v1010 = vunpack.c.l.b16 %v747
    %v1011 = vunpack.c.l.b16 %v748
    %v1012 = vunpack.c.l.b16 %v749
    %v1013 = vunpack.c.l.b16 %v750
    %v1014 = vunpack.c.l.b16 %v751
    %v1015 = vunpack.c.l.b16 %v752
    %v1016 = vunpack.c.l.b16 %v753
    %v1017 = vunpack.c.l.b16 %v754
    %v1018 = vunpack.c.l.b16 %v755
    %v1019 = vunpack.c.l.b16 %v756
    %v1020 = vunpack.c.l.b16 %v757
    %v1021 = vunpack.c.l.b16 %v758
    %v1022 = vunpack.c.l.b16 %v759
    %v1023 = vunpack.c.l.b16 %v760
    %v1024 = vunpack.c.l.b16 %v761
    %v1025 = vunpack.c.l.b16 %v762
    %v1026 = vunpack.c.l.b16 %v763
    %v1027 = vunpack.c.l.b16 %v764
    %v1028 = vunpack.c.l.b16 %v765
    %v1029 = vunpack.c.l.b16 %v766
    %v1030 = vunpack.c.l.b16 %v767
    %v1031 = vunpack.c.l.b16 %v768
    %v1032 = vunpack.c.l.b16 %v769
    %v1033 = vunpack.c.l.b16 %v770
    %v1034 = vunpack.c.l.b16 %v771
    %v1035 = vunpack.c.l.b16 %v772
    %v1036 = vunpack.c.l.b16 %v773
    %v1037 = vunpack.c.l.b16 %v774
    %v1038 = vunpack.c.l.b16 %v775
    %v1039 = vunpack.c.l.b16 %v776
    %v1040 = vunpack.c.l.b16 %v777
    %v1041 = vunpack.c.l.b16 %v778
    %v1042 = vunpack.c.l.b16 %v779
    %v1043 = vunpack.c.l.b16 %v780
    %v1044 = vunpack.c.l.b16 %v781
    %v1045 = vunpack.c.l.b16 %v782
    %v1046 = vunpack.c.l.b16 %v783
    %v1047 = vunpack.c.l.b16 %v784
    %v1048 = vunpack.c.l.b16 %v785
    %v1049 = vunpack.c.l.b16 %v786
    %v1050 = vunpack.c.l.b16 %v787
    %v1051 = vunpack.c.l.b16 %v788
    %v1052 = vunpack.c.l.b16 %v789
    %v1053 = vunpack.c.l.b16 %v790
    %v1054 = vunpack.c.l.b16 %v791
    %v1055 = vunpack.c.l.b16 %v792
    %v1056 = vunpack.c.l.b16 %v793
    %v1057 = vunpack.c.l.b16 %v794
    %v1058 = vunpack.c.l.b16 %v795
    %v1059 = vunpack.c.l.b16 %v796
    %v1060 = vunpack.c.l.b16 %v797
    %v1061 = vunpack.c.l.b16 %v798
    %v1062 = vunpack.c.l.b16 %v799
    %v1063 = vunpack.c.l.b16 %v800
    %v1064 = vunpack.c.l.b16 %v801
    %v1065 = vunpack.c.l.b16 %v802
    %v1066 = vunpack.c.l.b16 %v803
    %v1067 = vunpack.c.l.b16 %v804
    %v1068 = vunpack.c.l.b16 %v805
    %v1069 = vunpack.c.l.b16 %v806
    %v1070 = vunpack.c.l.b16 %v807
    %v1071 = vunpack.c.l.b16 %v808
    %v1072 = vunpack.c.l.b16 %v809
    %v1073 = vunpack.c.l.b16 %v810
    %v1074 = vunpack.c.l.b16 %v811
    %v1075 = vunpack.c.l.b16 %v812
    %v1076 = vunpack.c.l.b16 %v813
    %v1077 = vunpack.c.l.b16 %v814
    %v1078 = vunpack.c.l.b16 %v815
    %v1079 = vunpack.c.l.b16 %v816
    %v1080 = vunpack.c.l.b16 %v817
    %v1081 = vunpack.c.l.b16 %v818
    %v1082 = vunpack.c.l.b16 %v819
    %v1083 = vunpack.c.l.b16 %v820
    %v1084 = vunpack.c.l.b16 %v821
    %v1085 = vunpack.c.l.b16 %v822
    %v1086 = vunpack.c.l.b16 %v823
    %v1087 = vunpack.c.l.b16 %v824
    %v1088 = vunpack.c.l.b16 %v825
    %v1089 = vunpack.c.l.b16 %v826
    %v1090 = vunpack.c.l.b16 %v827
    %v1091 = vunpack.c.l.b16 %v828
    %v1092 = vunpack.c.l.b16 %v829
    %v1093 = vunpack.c.l.b16 %v830
    %v1094 = vunpack.c.l.b16 %v831
    %v1095 = vunpack.c.l.b16 %v832
    %v1096 = vunpack.c.l.b16 %v833
    %v1097 = vunpack.c.l.b16 %v834
    %v1098 = vunpack.c.l.b16 %v835
    %v1099 = vunpack.c.l.b16 %v836
    %v1100 = vunpack.c.l.b16 %v837
    %v1101 = vunpack.c.l.b16 %v838
    %v1102 = vunpack.c.l.b16 %v839
    %v1103 = vunpack.c.l.b16 %v840
    %v1104 = vunpack.c.l.b16 %v841
    %v1105 = vunpack.c.l.b16 %v842
    %v1106 = vunpack.c.l.b16 %v843
    %v1107 = vunpack.c.l.b16 %v844
    %v1108 = vunpack.c.l.b16 %v845
    %v1109 = vunpack.c.l.b16 %v846
    %v1110 = vunpack.c.l.b16 %v847
    %v1111 = vunpack.c.l.b16 %v848
    %v1112 = vunpack.c.l.b16 %v849
    %v1113 = vunpack.c.l.b16 %v850
    %v1114 = vunpack.c.l.b16 %v851
    %v1115 = vunpack.c.l.b16 %v852
    %v1116 = vunpack.c.l.b16 %v853
    %v1117 = vunpack.c.l.b16 %v854
    %v1118 = vunpack.c.l.b16 %v855
    %v1119 = vpack.c.b16 %v992, %v991
    %v1120 = vpack.c.b16 %v994, %v993
    %v1121 = vpack.c.b16 %v996, %v995
    %v1122 = vpack.c.b16 %v998, %v997
    %v1123 = vpack.c.b16 %v1000, %v999
    %v1124 = vpack.c.b16 %v1002, %v1001
    %v1125 = vpack.c.b16 %v1004, %v1003
    %v1126 = vpack.c.b16 %v1006, %v1005
    %v1127 = vpack.c.b16 %v1008, %v1007
    %v1128 = vpack.c.b16 %v1010, %v1009
    %v1129 = vpack.c.b16 %v1012, %v1011
    %v1130 = vpack.c.b16 %v1014, %v1013
    %v1131 = vpack.c.b16 %v1016, %v1015
    %v1132 = vpack.c.b16 %v1018, %v1017
    %v1133 = vpack.c.b16 %v1020, %v1019
    %v1134 = vpack.c.b16 %v1022, %v1021
    %v1135 = vpack.c.b16 %v1024, %v1023
    %v1136 = vpack.c.b16 %v1026, %v1025
    %v1137 = vpack.c.b16 %v1028, %v1027
    %v1138 = vpack.c.b16 %v1030, %v1029
    %v1139 = vpack.c.b16 %v1032, %v1031
    %v1140 = vpack.c.b16 %v1034, %v1033
    %v1141 = vpack.c.b16 %v1036, %v1035
    %v1142 = vpack.c.b16 %v1038, %v1037
    %v1143 = vpack.c.b16 %v1040, %v1039
    %v1144 = vpack.c.b16 %v1042, %v1041
    %v1145 = vpack.c.b16 %v1044, %v1043
    %v1146 = vpack.c.b16 %v1046, %v1045
    %v1147 = vpack.c.b16 %v1048, %v1047
    %v1148 = vpack.c.b16 %v1050, %v1049
    %v1149 = vpack.c.b16 %v1052, %v1051
    %v1150 = vpack.c.b16 %v1054, %v1053
    %v1151 = vpack.c.b16 %v1056, %v1055
    %v1152 = vpack.c.b16 %v1058, %v1057
    %v1153 = vpack.c.b16 %v1060, %v1059
    %v1154 = vpack.c.b16 %v1062, %v1061
    %v1155 = vpack.c.b16 %v1064, %v1063
    %v1156 = vpack.c.b16 %v1066, %v1065
    %v1157 = vpack.c.b16 %v1068, %v1067
    %v1158 = vpack.c.b16 %v1070, %v1069
    %v1159 = vpack.c.b16 %v1072, %v1071
    %v1160 = vpack.c.b16 %v1074, %v1073
    %v1161 = vpack.c.b16 %v1076, %v1075
    %v1162 = vpack.c.b16 %v1078, %v1077
    %v1163 = vpack.c.b16 %v1080, %v1079
    %v1164 = vpack.c.b16 %v1082, %v1081
    %v1165 = vpack.c.b16 %v1084, %v1083
    %v1166 = vpack.c.b16 %v1086, %v1085
    %v1167 = vpack.c.b16 %v1088, %v1087
    %v1168 = vpack.c.b16 %v1090, %v1089
    %v1169 = vpack.c.b16 %v1092, %v1091
    %v1170 = vpack.c.b16 %v1094, %v1093
    %v1171 = vpack.c.b16 %v1096, %v1095
    %v1172 = vpack.c.b16 %v1098, %v1097
    %v1173 = vpack.c.b16 %v1100, %v1099
    %v1174 = vpack.c.b16 %v1102, %v1101
    %v1175 = vpack.c.b16 %v1104, %v1103
    %v1176 = vpack.c.b16 %v1106, %v1105
    %v1177 = vpack.c.b16 %v1108, %v1107
    %v1178 = vpack.c.b16 %v1110, %v1109
    %v1179 = vpack.c.b16 %v1112, %v1111
    %v1180 = vpack.c.b16 %v1114, %v1113
    %v1181 = vpack.c.b16 %v1116, %v1115
    %v1182 = vpack.c.b16 %v1118, %v1117
    %1247 = vmatprep.subr.bf16.mxu0 0
    %1248 = vmatpush1.bf16.msra.mxu0 %v1119
    %1249 = vmatprep.subr.bf16.mxu0 0
    %1250 = vmatpush1.bf16.msra.mxu0 %v1120
    %1251 = vmatprep.subr.bf16.mxu0 0
    %1252 = vmatpush1.bf16.msra.mxu0 %v1121
    %1253 = vmatprep.subr.bf16.mxu0 0
    %1254 = vmatpush1.bf16.msra.mxu0 %v1122
    %1255 = vmatprep.subr.bf16.mxu0 0
    %1256 = vmatpush1.bf16.msra.mxu0 %v1123
    %1257 = vmatprep.subr.bf16.mxu0 0
    %1258 = vmatpush1.bf16.msra.mxu0 %v1124
    %1259 = vmatprep.subr.bf16.mxu0 0
    %1260 = vmatpush1.bf16.msra.mxu0 %v1125
    %1261 = vmatprep.subr.bf16.mxu0 0
    %1262 = vmatpush1.bf16.msra.mxu0 %v1126
    %1263 = vmatprep.subr.bf16.mxu0 0
    %1264 = vmatpush1.bf16.msra.mxu0 %v1127
    %1265 = vmatprep.subr.bf16.mxu0 0
    %1266 = vmatpush1.bf16.msra.mxu0 %v1128
    %1267 = vmatprep.subr.bf16.mxu0 0
    %1268 = vmatpush1.bf16.msra.mxu0 %v1129
    %1269 = vmatprep.subr.bf16.mxu0 0
    %1270 = vmatpush1.bf16.msra.mxu0 %v1130
    %1271 = vmatprep.subr.bf16.mxu0 0
    %1272 = vmatpush1.bf16.msra.mxu0 %v1131
    %1273 = vmatprep.subr.bf16.mxu0 0
    %1274 = vmatpush1.bf16.msra.mxu0 %v1132
    %1275 = vmatprep.subr.bf16.mxu0 0
    %1276 = vmatpush1.bf16.msra.mxu0 %v1133
    %1277 = vmatprep.subr.bf16.mxu0 0
    %1278 = vmatpush1.bf16.msra.mxu0 %v1134
    %1279 = vmatprep.mubr.bf16.mxu0 %v721
    %1280 = vmatmul.mubr.bf16.gmra.mrb[0].mxu0 %v720
    %v1281 = vpop.f32.mrb[0].mxu0
    %v1282 = vadd.f32 %v861, %v1281
    %v1283 = vpop.f32.mrb[0].mxu0
    %v1284 = vpop.f32.mrb[0].mxu0
    %v1285 = vpop.f32.mrb[0].mxu0
    %1286 = vdwg.mxu0
    %1287 = vmatprep.subr.bf16.mxu0 0
    %1288 = vmatpush1.bf16.msra.mxu0 %v1135
    %1289 = vmatprep.subr.bf16.mxu0 0
    %1290 = vmatpush1.bf16.msra.mxu0 %v1136
    %1291 = vmatprep.subr.bf16.mxu0 0
    %1292 = vmatpush1.bf16.msra.mxu0 %v1137
    %1293 = vmatprep.subr.bf16.mxu0 0
    %1294 = vmatpush1.bf16.msra.mxu0 %v1138
    %1295 = vmatprep.subr.bf16.mxu0 0
    %1296 = vmatpush1.bf16.msra.mxu0 %v1139
    %1297 = vmatprep.subr.bf16.mxu0 0
    %1298 = vmatpush1.bf16.msra.mxu0 %v1140
    %1299 = vmatprep.subr.bf16.mxu0 0
    %1300 = vmatpush1.bf16.msra.mxu0 %v1141
    %1301 = vmatprep.subr.bf16.mxu0 0
    %1302 = vmatpush1.bf16.msra.mxu0 %v1142
    %1303 = vmatprep.subr.bf16.mxu0 0
    %1304 = vmatpush1.bf16.msra.mxu0 %v1143
    %1305 = vmatprep.subr.bf16.mxu0 0
    %1306 = vmatpush1.bf16.msra.mxu0 %v1144
    %1307 = vmatprep.subr.bf16.mxu0 0
    %1308 = vmatpush1.bf16.msra.mxu0 %v1145
    %1309 = vmatprep.subr.bf16.mxu0 0
    %1310 = vmatpush1.bf16.msra.mxu0 %v1146
    %1311 = vmatprep.subr.bf16.mxu0 0
    %1312 = vmatpush1.bf16.msra.mxu0 %v1147
    %1313 = vmatprep.subr.bf16.mxu0 0
    %1314 = vmatpush1.bf16.msra.mxu0 %v1148
    %1315 = vmatprep.subr.bf16.mxu0 0
    %1316 = vmatpush1.bf16.msra.mxu0 %v1149
    %1317 = vmatprep.subr.bf16.mxu0 0
    %1318 = vmatpush1.bf16.msra.mxu0 %v1150
    %1319 = vmatprep.mubr.bf16.mxu0 %v723
    %1320 = vmatmul.mubr.bf16.gmra.mrb[0].mxu0 %v722
    %v1321 = vpop.f32.mrb[0].mxu0
    %v1322 = vadd.f32 %v1282, %v1321
    %v1323 = vpop.f32.mrb[0].mxu0
    %v1324 = vpop.f32.mrb[0].mxu0
    %v1325 = vpop.f32.mrb[0].mxu0
    %1326 = vdwg.mxu0
    %1327 = vmatprep.subr.bf16.mxu0 0
    %1328 = vmatpush1.bf16.msra.mxu0 %v1151
    %1329 = vmatprep.subr.bf16.mxu0 0
    %1330 = vmatpush1.bf16.msra.mxu0 %v1152
    %1331 = vmatprep.subr.bf16.mxu0 0
    %1332 = vmatpush1.bf16.msra.mxu0 %v1153
    %1333 = vmatprep.subr.bf16.mxu0 0
    %1334 = vmatpush1.bf16.msra.mxu0 %v1154
    %1335 = vmatprep.subr.bf16.mxu0 0
    %1336 = vmatpush1.bf16.msra.mxu0 %v1155
    %1337 = vmatprep.subr.bf16.mxu0 0
    %1338 = vmatpush1.bf16.msra.mxu0 %v1156
    %1339 = vmatprep.subr.bf16.mxu0 0
    %1340 = vmatpush1.bf16.msra.mxu0 %v1157
    %1341 = vmatprep.subr.bf16.mxu0 0
    %1342 = vmatpush1.bf16.msra.mxu0 %v1158
    %1343 = vmatprep.subr.bf16.mxu0 0
    %1344 = vmatpush1.bf16.msra.mxu0 %v1159
    %1345 = vmatprep.subr.bf16.mxu0 0
    %1346 = vmatpush1.bf16.msra.mxu0 %v1160
    %1347 = vmatprep.subr.bf16.mxu0 0
    %1348 = vmatpush1.bf16.msra.mxu0 %v1161
    %1349 = vmatprep.subr.bf16.mxu0 0
    %1350 = vmatpush1.bf16.msra.mxu0 %v1162
    %1351 = vmatprep.subr.bf16.mxu0 0
    %1352 = vmatpush1.bf16.msra.mxu0 %v1163
    %1353 = vmatprep.subr.bf16.mxu0 0
    %1354 = vmatpush1.bf16.msra.mxu0 %v1164
    %1355 = vmatprep.subr.bf16.mxu0 0
    %1356 = vmatpush1.bf16.msra.mxu0 %v1165
    %1357 = vmatprep.subr.bf16.mxu0 0
    %1358 = vmatpush1.bf16.msra.mxu0 %v1166
    %1359 = vmatprep.mubr.bf16.mxu0 %v725
    %1360 = vmatmul.mubr.bf16.gmra.mrb[0].mxu0 %v724
    %v1361 = vpop.f32.mrb[0].mxu0
    %v1362 = vadd.f32 %v1322, %v1361
    %v1363 = vpop.f32.mrb[0].mxu0
    %v1364 = vpop.f32.mrb[0].mxu0
    %v1365 = vpop.f32.mrb[0].mxu0
    %1366 = vdwg.mxu0
    %1367 = vmatprep.subr.bf16.mxu0 0
    %1368 = vmatpush1.bf16.msra.mxu0 %v1167
    %1369 = vmatprep.subr.bf16.mxu0 0
    %1370 = vmatpush1.bf16.msra.mxu0 %v1168
    %1371 = vmatprep.subr.bf16.mxu0 0
    %1372 = vmatpush1.bf16.msra.mxu0 %v1169
    %1373 = vmatprep.subr.bf16.mxu0 0
    %1374 = vmatpush1.bf16.msra.mxu0 %v1170
    %1375 = vmatprep.subr.bf16.mxu0 0
    %1376 = vmatpush1.bf16.msra.mxu0 %v1171
    %1377 = vmatprep.subr.bf16.mxu0 0
    %1378 = vmatpush1.bf16.msra.mxu0 %v1172
    %1379 = vmatprep.subr.bf16.mxu0 0
    %1380 = vmatpush1.bf16.msra.mxu0 %v1173
    %1381 = vmatprep.subr.bf16.mxu0 0
    %1382 = vmatpush1.bf16.msra.mxu0 %v1174
    %1383 = vmatprep.subr.bf16.mxu0 0
    %1384 = vmatpush1.bf16.msra.mxu0 %v1175
    %1385 = vmatprep.subr.bf16.mxu0 0
    %1386 = vmatpush1.bf16.msra.mxu0 %v1176
    %1387 = vmatprep.subr.bf16.mxu0 0
    %1388 = vmatpush1.bf16.msra.mxu0 %v1177
    %1389 = vmatprep.subr.bf16.mxu0 0
    %1390 = vmatpush1.bf16.msra.mxu0 %v1178
    %1391 = vmatprep.subr.bf16.mxu0 0
    %1392 = vmatpush1.bf16.msra.mxu0 %v1179
    %1393 = vmatprep.subr.bf16.mxu0 0
    %1394 = vmatpush1.bf16.msra.mxu0 %v1180
    %1395 = vmatprep.subr.bf16.mxu0 0
    %1396 = vmatpush1.bf16.msra.mxu0 %v1181
    %1397 = vmatprep.subr.bf16.mxu0 0
    %1398 = vmatpush1.bf16.msra.mxu0 %v1182
    %1399 = vmatprep.mubr.bf16.mxu0 %v727
    %1400 = vmatmul.mubr.bf16.gmra.mrb[0].mxu0 %v726
    %v1401 = vpop.f32.mrb[0].mxu0
    %v1402 = vadd.f32 %v1362, %v1401
    %v1403 = vpop.f32.mrb[0].mxu0
    %v1404 = vpop.f32.mrb[0].mxu0
    %v1405 = vpop.f32.mrb[0].mxu0
    %1406 = vdwg.mxu0
    %1407 = vst [vmem:[#allocation12] sm:$0xff] %v1402
    %v1408 = vmul.f32 %v1402, 0.5
    %v1409 = vmul.f32 %v1408, 1.442695
    %v1410 = vpow.pop %v1409
    %v1411 = vld [vmem:[%s7] sm:$0xff]
    %1413 = vrot.lane.b32.xlu0 %v1410, 64
    %v1414 = vpop.permute.xlu0 %1413
    %v1416 = vmul.f32 %v1411, %v1414
    %v1417 = vadd.f32 %v1402, %v1416
    %vm1418 = vcmask 523264
    %1419 = vst.msk [vmem:[#allocation11] sm:$0xff] %vm1418, %v1417
    // Predicated region
    $region54: #{tpu_custom_call.1} parent=1 // pred_check
      _
    $region55: #{tpu_custom_call.1} parent=1 // pred_check_branch
      %1421 = sbr.rel (0) target = $region57
    $region56: #{tpu_custom_call.1} parent=1 // pred_region
      %s1423 = ssub.s32 128, 128
      %1424 = vsyncadd [#allocation4], %s1423
      %s1426 = sshll.u32 [#allocation11], 4
      %s1427 = int_to_ptr.vmem [resolvable:$true] %s1426
      %1429 = dma.vmem_to_hbm [thread:$0]  %s1427, 128, %s8, [#allocation4]
    $region57: #{tpu_custom_call.1} parent=1 // pred_fallthru
      _
    // Predicated region
    $region58: #{tpu_custom_call.1} parent=1 // pred_check
      _
    $region59: #{tpu_custom_call.1} parent=1 // pred_check_branch
      %1431 = sbr.rel (0) target = $region61
    $region60: #{tpu_custom_call.1} parent=1 // pred_region
      %s1433 = ssub.s32 128, 128
      %1434 = vsyncadd [#allocation13], %s1433
      %s1436 = sshll.u32 [#allocation12], 4
      %s1437 = int_to_ptr.vmem [resolvable:$true] %s1436
      %1439 = dma.vmem_to_hbm [thread:$0]  %s1437, 128, %s9, [#allocation13]
    $region61: #{tpu_custom_call.1} parent=1 // pred_fallthru
      _
    // Predicated region
    $region62: #{tpu_custom_call.1} parent=1 // pred_check
      _
    $region63: #{tpu_custom_call.1} parent=1 // pred_check_branch
      %1441 = sbr.rel (0) target = $region65
    $region64: #{tpu_custom_call.1} parent=1 // pred_region
      %1442 = dma.done [#allocation4], 128
    $region65: #{tpu_custom_call.1} parent=1 // pred_fallthru
      _
    // Predicated region
    $region66: #{tpu_custom_call.1} parent=1 // pred_check
      _
    $region67: #{tpu_custom_call.1} parent=1 // pred_check_branch
      %1444 = sbr.rel (0) target = $region69
    $region68: #{tpu_custom_call.1} parent=1 // pred_region
      %1445 = dma.done [#allocation13], 128
    $region69: #{tpu_custom_call.1} parent=1 // pred_fallthru
      _
    %1446 = vsyncpa [#allocation3], 1
    %1447 = vsyncpa [#allocation6], 1
    %1448 = vsyncpa [#allocation9], 1
    %1449 = vsyncpa [#allocation4], 1
    %1450 = vsyncpa [#allocation13], 1

</llo_original>
